<compile_context>
chip_gen: v6e
topology: v6e:2x2x1
jax: 0.10.0
libtpu: 0.0.40
codegen_flags: <defaults>
</compile_context>

<pallas_src>
import jax
import jax.numpy as jnp
from jax.experimental import pallas as pl
from jax.experimental.pallas import tpu as pltpu


_ALIGN = 16  # sublane alignment that also covers bf16 (16, 128) packing


def _round_up(x, m):
    return ((x + m - 1) // m) * m


def _critic_kernel(x_ref, w1_ref, b1_ref, w2_ref, b2_ref, w3_ref, b3_ref,
                   out_ref):
    """One batch tile: (tanh(tanh(x@W1+b1)@W2+b2) . w3) + b3.

    - The two real matmuls (K=D, K=64, N=64) run on the MXU with f32
      accumulation; operands may be bf16 (v6e/v7x fast path) or f32.
    - Bias adds + tanh stay in f32 on the VPU/EUP.
    - The degenerate (tile_b,64)x(64,1) final matmul is replaced by a VPU
      multiply + XLU lane-reduce, which overlaps with the MXU work.
    """
    x = x_ref[...]                                            # (tile_b, D)

    h1 = jnp.dot(x, w1_ref[...], preferred_element_type=jnp.float32)
    h1 = jnp.tanh(h1 + b1_ref[...])                           # f32 (tile_b, F1)

    h2 = jnp.dot(h1.astype(w2_ref.dtype), w2_ref[...],
                 preferred_element_type=jnp.float32)
    h2 = jnp.tanh(h2 + b2_ref[...])                           # f32 (tile_b, F2)

    # value[b] = sum_j h2[b, j] * w3[j] + b3   (lane reduce, not MXU)
    v = jnp.sum(h2 * w3_ref[...], axis=-1, keepdims=True) + b3_ref[...]

    out_ref[...] = v.astype(out_ref.dtype)


def critic_forward(state, params, *, tile_b=1024, use_bf16_matmul=True):
    """state: (B, input_dim) float32. Returns (B, 1) float32 value estimates."""
    w1, b1, w2, b2, w3_row, b3 = params
    B, D = state.shape
    F1 = w1.shape[1]
    F2 = w2.shape[1]

    if use_bf16_matmul:
        # bf16 MXU operands halve HBM traffic for the dominant (state) stream
        # on v6e/v7x; accumulation stays f32 inside the kernel.
        state = state.astype(jnp.bfloat16)
        w1 = w1.astype(jnp.bfloat16)
        w2 = w2.astype(jnp.bfloat16)

    # Batch tiling: big tiles amortize per-grid-step overhead; per-step VMEM is
    # tiny (tile_b * D + weights). Pad B up to a multiple of the tile.
    tile_b = _round_up(max(_ALIGN, min(tile_b, _round_up(B, _ALIGN))), _ALIGN)
    b_pad = _round_up(B, tile_b)
    if b_pad != B:
        state = jnp.pad(state, ((0, b_pad - B), (0, 0)))
    n_tiles = b_pad // tile_b

    def const_spec(a):
        nd = a.ndim
        return pl.BlockSpec(a.shape, lambda i: (0,) * nd)   # VMEM-resident

    weight_args = (w1, b1, w2, b2, w3_row, b3)
    weight_bytes = sum(int(a.size) * a.dtype.itemsize for a in weight_args)
    cost = pl.CostEstimate(
        flops=2 * b_pad * (D * F1 + F1 * F2 + F2),
        transcendentals=b_pad * (F1 + F2),
        bytes_accessed=int(state.size) * state.dtype.itemsize
        + weight_bytes + b_pad * 4,
    )

    out = pl.pallas_call(
        _critic_kernel,
        out_shape=jax.ShapeDtypeStruct((b_pad, 1), jnp.float32),
        grid=(n_tiles,),
        in_specs=[pl.BlockSpec((tile_b, D), lambda i: (i, 0))]
        + [const_spec(a) for a in weight_args],
        out_specs=pl.BlockSpec((tile_b, 1), lambda i: (i, 0)),
        compiler_params=pltpu.CompilerParams(
            dimension_semantics=("parallel",)),   # v7x: batch across both TCs
        cost_estimate=cost,
    )(state, *weight_args)

    return out[:B]


def init_critic_params(key, input_dim, fc1_dims=64, fc2_dims=64):
    """PyTorch Linear default init: U(-1/sqrt(fan_in), 1/sqrt(fan_in)).
    Weights stored as (in_features, out_features); the last layer's weight is
    stored as a (1, fc2_dims) row for the in-kernel lane reduce."""
    ks = jax.random.split(key, 6)

    def uni(k, shape, fan_in):
        bound = 1.0 / jnp.sqrt(jnp.float32(fan_in))
        return jax.random.uniform(k, shape, jnp.float32, -bound, bound)

    w1 = uni(ks[0], (input_dim, fc1_dims), input_dim)
    b1 = uni(ks[1], (1, fc1_dims), input_dim)
    w2 = uni(ks[2], (fc1_dims, fc2_dims), fc1_dims)
    b2 = uni(ks[3], (1, fc2_dims), fc1_dims)
    w3 = uni(ks[4], (1, fc2_dims), fc2_dims)     # (out=1, in=fc2) as a row
    b3 = uni(ks[5], (1, 1), fc2_dims)
    return (w1, b1, w2, b2, w3, b3)


def critic_forward_ref(state, params):
    w1, b1, w2, b2, w3_row, b3 = params
    h1 = jnp.tanh(state @ w1 + b1)
    h2 = jnp.tanh(h1 @ w2 + b2)
    return h2 @ w3_row.T + b3


if __name__ == "__main__":
    key = jax.random.PRNGKey(0)
    k_param, k_state, k_state2 = jax.random.split(key, 3)

    input_dim = 8     # e.g. input_dims = (8,) for a small gym env
    batch = 8

    params = init_critic_params(k_param, input_dim, fc1_dims=64, fc2_dims=64)
    state = jax.random.normal(k_state, (batch, input_dim), jnp.float32)
    ref = critic_forward_ref(state, params)

    # Exact f32 path.
    v_f32 = jax.block_until_ready(
        critic_forward(state, params, use_bf16_matmul=False))
    assert v_f32.shape == (batch, 1), v_f32.shape
    assert jnp.allclose(v_f32, ref, atol=1e-5, rtol=1e-5), (
        "f32 Pallas output mismatch vs JAX reference")

    # bf16-MXU fast path (v6e/v7x) — looser tolerance for bf16 operands.
    v_bf16 = jax.block_until_ready(
        critic_forward(state, params, use_bf16_matmul=True))
    assert v_bf16.shape == (batch, 1), v_bf16.shape
    assert jnp.allclose(v_bf16, ref, atol=3e-2, rtol=3e-2), (
        "bf16 Pallas output mismatch vs JAX reference")

    # Multi-tile grid + padded batch (B not a multiple of tile_b).
    state2 = jax.random.normal(k_state2, (40, input_dim), jnp.float32)
    ref2 = critic_forward_ref(state2, params)
    v2 = jax.block_until_ready(
        critic_forward(state2, params, tile_b=16, use_bf16_matmul=False))
    assert v2.shape == (40, 1), v2.shape
    assert jnp.allclose(v2, ref2, atol=1e-5, rtol=1e-5), (
        "tiled/padded Pallas output mismatch vs JAX reference")

    print("KERNEL_OK")
</pallas_src>

<mosaic_0001>
module attributes {stable_mosaic.version = 11 : i64} {
  func.func @_critic_kernel(%arg0: i32, %arg1: memref<16x8xf32, #tpu.memory_space<vmem>>, %arg2: memref<8x64xf32, #tpu.memory_space<vmem>>, %arg3: memref<1x64xf32, #tpu.memory_space<vmem>>, %arg4: memref<64x64xf32, #tpu.memory_space<vmem>>, %arg5: memref<1x64xf32, #tpu.memory_space<vmem>>, %arg6: memref<1x64xf32, #tpu.memory_space<vmem>>, %arg7: memref<1x1xf32, #tpu.memory_space<vmem>>, %arg8: memref<16x1xf32, #tpu.memory_space<vmem>>) attributes {dimension_semantics = [#tpu.dimension_semantics<parallel>], iteration_bounds = array<i64: 1>, scalar_prefetch = 0 : i64, scratch_operands = 0 : i64, tpu.core_type = #tpu.core_type<tc>, window_params = [{transform_indices = @transform_0, window_bounds = array<i64: 16, 8>}, {pipeline_mode = #tpu.pipeline_mode<synchronous>, transform_indices = @transform_1, window_bounds = array<i64: 8, 64>}, {pipeline_mode = #tpu.pipeline_mode<synchronous>, transform_indices = @transform_2, window_bounds = array<i64: 1, 64>}, {pipeline_mode = #tpu.pipeline_mode<synchronous>, transform_indices = @transform_3, window_bounds = array<i64: 64, 64>}, {pipeline_mode = #tpu.pipeline_mode<synchronous>, transform_indices = @transform_4, window_bounds = array<i64: 1, 64>}, {pipeline_mode = #tpu.pipeline_mode<synchronous>, transform_indices = @transform_5, window_bounds = array<i64: 1, 64>}, {pipeline_mode = #tpu.pipeline_mode<synchronous>, transform_indices = @transform_6, window_bounds = array<i64: 1, 1>}, {transform_indices = @transform_7, window_bounds = array<i64: 16, 1>}]} {
    %c0 = arith.constant 0 : index
    %c0_0 = arith.constant 0 : index
    %0 = vector.load %arg1[%c0, %c0_0] : memref<16x8xf32, #tpu.memory_space<vmem>>, vector<16x8xf32>
    %c0_1 = arith.constant 0 : index
    %c0_2 = arith.constant 0 : index
    %1 = vector.load %arg2[%c0_1, %c0_2] : memref<8x64xf32, #tpu.memory_space<vmem>>, vector<8x64xf32>
    %cst = arith.constant dense<0.000000e+00> : vector<16x64xf32>
    %2 = tpu.matmul %0, %1, %cst {dimension_numbers = #tpu.dot_dimension_numbers<[1], [0], [0], [1], [0, 0, 1, 1], [], []>} : vector<16x8xf32>, vector<8x64xf32>, vector<16x64xf32> -> vector<16x64xf32>
    %c0_3 = arith.constant 0 : index
    %c0_4 = arith.constant 0 : index
    %3 = vector.load %arg3[%c0_3, %c0_4] : memref<1x64xf32, #tpu.memory_space<vmem>>, vector<1x64xf32>
    %4 = vector.broadcast %3 : vector<1x64xf32> to vector<16x64xf32>
    %5 = arith.addf %2, %4 : vector<16x64xf32>
    %6 = math.tanh %5 : vector<16x64xf32>
    %c0_5 = arith.constant 0 : index
    %c0_6 = arith.constant 0 : index
    %7 = vector.load %arg4[%c0_5, %c0_6] : memref<64x64xf32, #tpu.memory_space<vmem>>, vector<64x64xf32>
    %cst_7 = arith.constant dense<0.000000e+00> : vector<16x64xf32>
    %8 = tpu.matmul %6, %7, %cst_7 {dimension_numbers = #tpu.dot_dimension_numbers<[1], [0], [0], [1], [0, 0, 1, 1], [], []>} : vector<16x64xf32>, vector<64x64xf32>, vector<16x64xf32> -> vector<16x64xf32>
    %c0_8 = arith.constant 0 : index
    %c0_9 = arith.constant 0 : index
    %9 = vector.load %arg5[%c0_8, %c0_9] : memref<1x64xf32, #tpu.memory_space<vmem>>, vector<1x64xf32>
    %10 = vector.broadcast %9 : vector<1x64xf32> to vector<16x64xf32>
    %11 = arith.addf %8, %10 : vector<16x64xf32>
    %12 = math.tanh %11 : vector<16x64xf32>
    %c0_10 = arith.constant 0 : index
    %c0_11 = arith.constant 0 : index
    %13 = vector.load %arg6[%c0_10, %c0_11] : memref<1x64xf32, #tpu.memory_space<vmem>>, vector<1x64xf32>
    %14 = vector.broadcast %13 : vector<1x64xf32> to vector<16x64xf32>
    %15 = arith.mulf %12, %14 : vector<16x64xf32>
    %cst_12 = arith.constant dense<0.000000e+00> : vector<16xf32>
    %16 = vector.multi_reduction <add>, %15, %cst_12 [1] : vector<16x64xf32> to vector<16xf32>
    %17 = vector.shape_cast %16 : vector<16xf32> to vector<16x1xf32>
    %c0_13 = arith.constant 0 : index
    %c0_14 = arith.constant 0 : index
    %18 = vector.load %arg7[%c0_13, %c0_14] : memref<1x1xf32, #tpu.memory_space<vmem>>, vector<1x1xf32>
    %19 = vector.broadcast %18 : vector<1x1xf32> to vector<16x1xf32>
    %20 = arith.addf %17, %19 : vector<16x1xf32>
    %c0_15 = arith.constant 0 : index
    %c0_16 = arith.constant 0 : index
    %21 = vector.load %arg8[%c0_15, %c0_16] : memref<16x1xf32, #tpu.memory_space<vmem>>, vector<16x1xf32>
    tpu.vector_store %arg8[%c0_15, %c0_16], %20 {strides = array<i32>} : memref<16x1xf32, #tpu.memory_space<vmem>>, vector<16x1xf32>,
    return
  }
  func.func @transform_0(%arg0: i32) -> (i32, i32) {
    %c0_i32 = arith.constant 0 : i32
    %c0_i32_0 = arith.constant 0 : i32
    return %arg0, %c0_i32 : i32, i32
  }
  func.func @transform_1(%arg0: i32) -> (i32, i32) {
    %c0_i32 = arith.constant 0 : i32
    %c0_i32_0 = arith.constant 0 : i32
    %c0_i32_1 = arith.constant 0 : i32
    return %c0_i32, %c0_i32_0 : i32, i32
  }
  func.func @transform_2(%arg0: i32) -> (i32, i32) {
    %c0_i32 = arith.constant 0 : i32
    %c0_i32_0 = arith.constant 0 : i32
    %c0_i32_1 = arith.constant 0 : i32
    return %c0_i32, %c0_i32_0 : i32, i32
  }
  func.func @transform_3(%arg0: i32) -> (i32, i32) {
    %c0_i32 = arith.constant 0 : i32
    %c0_i32_0 = arith.constant 0 : i32
    %c0_i32_1 = arith.constant 0 : i32
    return %c0_i32, %c0_i32_0 : i32, i32
  }
  func.func @transform_4(%arg0: i32) -> (i32, i32) {
    %c0_i32 = arith.constant 0 : i32
    %c0_i32_0 = arith.constant 0 : i32
    %c0_i32_1 = arith.constant 0 : i32
    return %c0_i32, %c0_i32_0 : i32, i32
  }
  func.func @transform_5(%arg0: i32) -> (i32, i32) {
    %c0_i32 = arith.constant 0 : i32
    %c0_i32_0 = arith.constant 0 : i32
    %c0_i32_1 = arith.constant 0 : i32
    return %c0_i32, %c0_i32_0 : i32, i32
  }
  func.func @transform_6(%arg0: i32) -> (i32, i32) {
    %c0_i32 = arith.constant 0 : i32
    %c0_i32_0 = arith.constant 0 : i32
    %c0_i32_1 = arith.constant 0 : i32
    return %c0_i32, %c0_i32_0 : i32, i32
  }
  func.func @transform_7(%arg0: i32) -> (i32, i32) {
    %c0_i32 = arith.constant 0 : i32
    %c0_i32_0 = arith.constant 0 : i32
    return %arg0, %c0_i32 : i32, i32
  }
}

</mosaic_0001>

<llo_original>
// kernel: tpu_custom_call.1
$region0: #{tpu_custom_call.1}
  #allocation0 [shape = 'u32[]', space=smem, size = 0x4, offset = 0x4, fixed_abs, tag = 'smem constant byte address 0x4 - core index']
  #allocation1 [shape = 'u32[144,128]{1,0:T(1,128)}', space=vmem, size = 0x12000, scoped, tag = 'internal scratch']
  #allocation2 [shape = 'f32[1,1]{1,0:T(1,128)S(1)}', space=vmem, size = 0x200, scoped, tag = 'scoped memory for tpu_custom_call.1']
  %s0 = inlined_call_operand.vmem [shape: f32[16,8], index: 0, kind: input, shape index: {}]
  %s1 = inlined_call_operand.vmem [shape: f32[8,64], index: 1, kind: input, shape index: {}]
  %s2 = inlined_call_operand.vmem [shape: f32[1,64], index: 2, kind: input, shape index: {}]
  %s3 = inlined_call_operand.hbm [shape: f32[64,64], index: 3, kind: input, shape index: {}]
  %s4 = inlined_call_operand.vmem [shape: f32[1,64], index: 4, kind: input, shape index: {}]
  %s5 = inlined_call_operand.vmem [shape: f32[1,64], index: 5, kind: input, shape index: {}]
  %s6 = inlined_call_operand.<no memory space> [shape: f32[1,1], index: 6, kind: input, shape index: {}]
  %s7 = inlined_call_operand.vmem [shape: f32[16,1], index: 7, kind: output, shape index: {}]
  %s8 = sld [smem:[#allocation0]]
  $region42: #{tpu_custom_call.1} parent=0
    _
  %s10 = ssub.s32 1, %s8
  %s11 = scalar_select 0, %s10, %s8
  %v12 = vstv %s6
  %13 = vst [vmem:[#allocation2] sm:$0x1] %v12
  $region1: #{tpu_custom_call.1} parent=0
    #allocation3 [shape = 'u8[32768]{0}', space=vmem, size = 0x8000, scoped, tag = 'input window, operand 3, single buffered']
    #allocation4 [shape = 's32[1]{0}', space=sflag, size = 0x4, scoped, tag = 'scoped memory for tpu_custom_call.1']
    %14 = vsyncpa [#allocation4], 0
    // Predicated region
    $region2: #{tpu_custom_call.1} parent=1 // pred_check
      _
    $region3: #{tpu_custom_call.1} parent=1 // pred_check_branch
      %16 = sbr.rel (0) target = $region5
    $region4: #{tpu_custom_call.1} parent=1 // pred_region
      _
    $region5: #{tpu_custom_call.1} parent=1 // pred_fallthru
      _
    // Predicated region
    $region6: #{tpu_custom_call.1} parent=1 // pred_check
      _
    $region7: #{tpu_custom_call.1} parent=1 // pred_check_branch
      %18 = sbr.rel (0) target = $region9
    $region8: #{tpu_custom_call.1} parent=1 // pred_region
      _
    $region9: #{tpu_custom_call.1} parent=1 // pred_fallthru
      _
    // Predicated region
    $region10: #{tpu_custom_call.1} parent=1 // pred_check
      _
    $region11: #{tpu_custom_call.1} parent=1 // pred_check_branch
      %20 = sbr.rel (0) target = $region13
    $region12: #{tpu_custom_call.1} parent=1 // pred_region
      _
    $region13: #{tpu_custom_call.1} parent=1 // pred_fallthru
      _
    // Predicated region
    $region14: #{tpu_custom_call.1} parent=1 // pred_check
      _
    $region15: #{tpu_custom_call.1} parent=1 // pred_check_branch
      %22 = sbr.rel (0) target = $region17
    $region16: #{tpu_custom_call.1} parent=1 // pred_region
      %s24 = ssub.s32 1024, 1024
      %25 = vsyncadd [#allocation4], %s24
      %s26 = sshll.u32 [#allocation3], 4
      %s27 = int_to_ptr.vmem [resolvable:$true] %s26
      %32 = dma.hbm_to_vmem [thread:$0]  %s3, 1024, %s27, [#allocation4], 128, 128, 8
    $region17: #{tpu_custom_call.1} parent=1 // pred_fallthru
      _
    // Predicated region
    $region18: #{tpu_custom_call.1} parent=1 // pred_check
      _
    $region19: #{tpu_custom_call.1} parent=1 // pred_check_branch
      %34 = sbr.rel (0) target = $region21
    $region20: #{tpu_custom_call.1} parent=1 // pred_region
      _
    $region21: #{tpu_custom_call.1} parent=1 // pred_fallthru
      _
    // Predicated region
    $region22: #{tpu_custom_call.1} parent=1 // pred_check
      _
    $region23: #{tpu_custom_call.1} parent=1 // pred_check_branch
      %36 = sbr.rel (0) target = $region25
    $region24: #{tpu_custom_call.1} parent=1 // pred_region
      _
    $region25: #{tpu_custom_call.1} parent=1 // pred_fallthru
      _
    // Predicated region
    $region26: #{tpu_custom_call.1} parent=1 // pred_check
      _
    $region27: #{tpu_custom_call.1} parent=1 // pred_check_branch
      %38 = sbr.rel (0) target = $region29
    $region28: #{tpu_custom_call.1} parent=1 // pred_region
      _
    $region29: #{tpu_custom_call.1} parent=1 // pred_fallthru
      _
    // Predicated region
    $region30: #{tpu_custom_call.1} parent=1 // pred_check
      _
    $region31: #{tpu_custom_call.1} parent=1 // pred_check_branch
      %40 = sbr.rel (0) target = $region33
    $region32: #{tpu_custom_call.1} parent=1 // pred_region
      %41 = dma.done [#allocation4], 1024
    $region33: #{tpu_custom_call.1} parent=1 // pred_fallthru
      _
    %v42 = vld [vmem:[%s0] sm:$0xff]
    %v43 = vld [vmem:[%s0 + $0x8] sm:$0xff]
    %v44 = vld [vmem:[%s1] sm:$0xff]
    %v45 = vld [vmem:[%s2] sm:$0x1]
    %v47 = vlaneseq
    %v48 = vshrl.u32 %v47, 7
    %v49 = vsub.s32 0, %v48
    %v50 = vrot.slane %v45, %v49
    %vm52 = vcmask 64512
    %v54 = vsel %vm52, %v42, 0
    %v57 = vsel %vm52, %v43, 0
    %59 = vmatprep.subr.mxu0 0.0
    %60 = vmatpush1.msra.mxu0 0.0
    %61 = vmatprep.subr.mxu0 0.0
    %62 = vmatpush1.msra.mxu0 0.0
    %63 = vmatprep.subr.mxu0 0.0
    %64 = vmatpush1.msra.mxu0 0.0
    %65 = vmatprep.subr.mxu0 0.0
    %66 = vmatpush1.msra.mxu0 0.0
    %67 = vmatprep.subr.mxu0 0.0
    %68 = vmatpush1.msra.mxu0 0.0
    %69 = vmatprep.subr.mxu0 0.0
    %70 = vmatpush1.msra.mxu0 0.0
    %71 = vmatprep.subr.mxu0 0.0
    %72 = vmatpush1.msra.mxu0 0.0
    %73 = vmatprep.subr.mxu0 0.0
    %74 = vmatpush1.msra.mxu0 0.0
    %75 = vmatprep.subr.mxu0 0.0
    %76 = vmatpush1.msra.mxu0 0.0
    %77 = vmatprep.subr.mxu0 0.0
    %78 = vmatpush1.msra.mxu0 0.0
    %79 = vmatprep.subr.mxu0 0.0
    %80 = vmatpush1.msra.mxu0 0.0
    %81 = vmatprep.subr.mxu0 0.0
    %82 = vmatpush1.msra.mxu0 0.0
    %83 = vmatprep.subr.mxu0 0.0
    %84 = vmatpush1.msra.mxu0 0.0
    %85 = vmatprep.subr.mxu0 0.0
    %86 = vmatpush1.msra.mxu0 0.0
    %87 = vmatprep.subr.mxu0 0.0
    %88 = vmatpush1.msra.mxu0 0.0
    %89 = vmatprep.subr.mxu0 0.0
    %90 = vmatpush1.msra.mxu0 %v44
    %91 = vmatprep.subr.mxu0 0.0
    %92 = vmatpush2.msra.mxu0 0.0
    %93 = vmatprep.subr.mxu0 0.0
    %94 = vmatpush2.msra.mxu0 0.0
    %95 = vmatprep.subr.mxu0 0.0
    %96 = vmatpush2.msra.mxu0 0.0
    %97 = vmatprep.subr.mxu0 0.0
    %98 = vmatpush2.msra.mxu0 0.0
    %99 = vmatprep.subr.mxu0 0.0
    %100 = vmatpush2.msra.mxu0 0.0
    %101 = vmatprep.subr.mxu0 0.0
    %102 = vmatpush2.msra.mxu0 0.0
    %103 = vmatprep.subr.mxu0 0.0
    %104 = vmatpush2.msra.mxu0 0.0
    %105 = vmatprep.subr.mxu0 0.0
    %106 = vmatpush2.msra.mxu0 0.0
    %107 = vmatprep.subr.mxu0 0.0
    %108 = vmatpush2.msra.mxu0 0.0
    %109 = vmatprep.subr.mxu0 0.0
    %110 = vmatpush2.msra.mxu0 0.0
    %111 = vmatprep.subr.mxu0 0.0
    %112 = vmatpush2.msra.mxu0 0.0
    %113 = vmatprep.subr.mxu0 0.0
    %114 = vmatpush2.msra.mxu0 0.0
    %115 = vmatprep.subr.mxu0 0.0
    %116 = vmatpush2.msra.mxu0 0.0
    %117 = vmatprep.subr.mxu0 0.0
    %118 = vmatpush2.msra.mxu0 0.0
    %119 = vmatprep.subr.mxu0 0.0
    %120 = vmatpush2.msra.mxu0 0.0
    %121 = vmatprep.subr.mxu0 0.0
    %122 = vmatpush2.msra.mxu0 0.0
    %123 = vmatprep.mubr.f32.mxu0 0.0
    %124 = vmatmul.mubr.f32.gmra.mxu0 %v54
    %v125 = vpop.f32.mrf.mxu0
    %v126 = vadd.f32 %v50, %v125
    %v127 = vpop.f32.mrf.mxu0
    %128 = vmatprep.mubr.f32.mxu0 0.0
    %129 = vmatmul.mubr.f32.gmra.mxu0 %v57
    %v130 = vpop.f32.mrf.mxu0
    %v131 = vadd.f32 %v50, %v130
    %v132 = vpop.f32.mrf.mxu0
    %133 = vdwg.mxu0
    %v134 = vtanh.pop %v126
    %v135 = vtanh.pop %v131
    %v136 = vld [vmem:[#allocation3] sm:$0xff]
    %v137 = vld [vmem:[#allocation3 + $0x8] sm:$0xff]
    %v138 = vld [vmem:[#allocation3 + $0x10] sm:$0xff]
    %v139 = vld [vmem:[#allocation3 + $0x18] sm:$0xff]
    %v140 = vld [vmem:[#allocation3 + $0x20] sm:$0xff]
    %v141 = vld [vmem:[#allocation3 + $0x28] sm:$0xff]
    %v142 = vld [vmem:[#allocation3 + $0x30] sm:$0xff]
    %v143 = vld [vmem:[#allocation3 + $0x38] sm:$0xff]
    %v144 = vld [vmem:[%s4] sm:$0x1]
    %v146 = vlaneseq
    %v147 = vshrl.u32 %v146, 7
    %v148 = vsub.s32 0, %v147
    %v149 = vrot.slane %v144, %v148
    %vm151 = vcmask 523264
    %v153 = vsel %vm151, %v134, 0
    %v156 = vsel %vm151, %v135, 0
    %158 = vmatprep.subr.mxu0 0.0
    %159 = vmatpush1.msra.mxu0 0.0
    %160 = vmatprep.subr.mxu0 0.0
    %161 = vmatpush1.msra.mxu0 0.0
    %162 = vmatprep.subr.mxu0 0.0
    %163 = vmatpush1.msra.mxu0 0.0
    %164 = vmatprep.subr.mxu0 0.0
    %165 = vmatpush1.msra.mxu0 0.0
    %166 = vmatprep.subr.mxu0 0.0
    %167 = vmatpush1.msra.mxu0 0.0
    %168 = vmatprep.subr.mxu0 0.0
    %169 = vmatpush1.msra.mxu0 0.0
    %170 = vmatprep.subr.mxu0 0.0
    %171 = vmatpush1.msra.mxu0 0.0
    %172 = vmatprep.subr.mxu0 0.0
    %173 = vmatpush1.msra.mxu0 0.0
    %174 = vmatprep.subr.mxu0 0.0
    %175 = vmatpush1.msra.mxu0 %v143
    %176 = vmatprep.subr.mxu0 0.0
    %177 = vmatpush1.msra.mxu0 %v142
    %178 = vmatprep.subr.mxu0 0.0
    %179 = vmatpush1.msra.mxu0 %v141
    %180 = vmatprep.subr.mxu0 0.0
    %181 = vmatpush1.msra.mxu0 %v140
    %182 = vmatprep.subr.mxu0 0.0
    %183 = vmatpush1.msra.mxu0 %v139
    %184 = vmatprep.subr.mxu0 0.0
    %185 = vmatpush1.msra.mxu0 %v138
    %186 = vmatprep.subr.mxu0 0.0
    %187 = vmatpush1.msra.mxu0 %v137
    %188 = vmatprep.subr.mxu0 0.0
    %189 = vmatpush1.msra.mxu0 %v136
    %190 = vmatprep.subr.mxu0 0.0
    %191 = vmatpush2.msra.mxu0 0.0
    %192 = vmatprep.subr.mxu0 0.0
    %193 = vmatpush2.msra.mxu0 0.0
    %194 = vmatprep.subr.mxu0 0.0
    %195 = vmatpush2.msra.mxu0 0.0
    %196 = vmatprep.subr.mxu0 0.0
    %197 = vmatpush2.msra.mxu0 0.0
    %198 = vmatprep.subr.mxu0 0.0
    %199 = vmatpush2.msra.mxu0 0.0
    %200 = vmatprep.subr.mxu0 0.0
    %201 = vmatpush2.msra.mxu0 0.0
    %202 = vmatprep.subr.mxu0 0.0
    %203 = vmatpush2.msra.mxu0 0.0
    %204 = vmatprep.subr.mxu0 0.0
    %205 = vmatpush2.msra.mxu0 0.0
    %206 = vmatprep.subr.mxu0 0.0
    %207 = vmatpush2.msra.mxu0 0.0
    %208 = vmatprep.subr.mxu0 0.0
    %209 = vmatpush2.msra.mxu0 0.0
    %210 = vmatprep.subr.mxu0 0.0
    %211 = vmatpush2.msra.mxu0 0.0
    %212 = vmatprep.subr.mxu0 0.0
    %213 = vmatpush2.msra.mxu0 0.0
    %214 = vmatprep.subr.mxu0 0.0
    %215 = vmatpush2.msra.mxu0 0.0
    %216 = vmatprep.subr.mxu0 0.0
    %217 = vmatpush2.msra.mxu0 0.0
    %218 = vmatprep.subr.mxu0 0.0
    %219 = vmatpush2.msra.mxu0 0.0
    %220 = vmatprep.subr.mxu0 0.0
    %221 = vmatpush2.msra.mxu0 0.0
    %222 = vmatprep.mubr.f32.mxu0 0.0
    %223 = vmatmul.mubr.f32.gmra.mxu0 %v153
    %v224 = vpop.f32.mrf.mxu0
    %v225 = vadd.f32 %v149, %v224
    %v226 = vpop.f32.mrf.mxu0
    %227 = vmatprep.mubr.f32.mxu0 0.0
    %228 = vmatmul.mubr.f32.gmra.mxu0 %v156
    %v229 = vpop.f32.mrf.mxu0
    %v230 = vadd.f32 %v149, %v229
    %v231 = vpop.f32.mrf.mxu0
    %232 = vdwg.mxu0
    %v233 = vtanh.pop %v225
    %v234 = vtanh.pop %v230
    %v235 = vld [vmem:[%s5] sm:$0x1]
    %v237 = vlaneseq
    %v238 = vshrl.u32 %v237, 7
    %v239 = vsub.s32 0, %v238
    %v240 = vrot.slane %v235, %v239
    %v242 = vmul.f32 %v233, %v240
    %v243 = vmul.f32 %v234, %v240
    %v244 = vsel %vm151, %v242, 0.0
    %245 = vadd.xlane.f32.xlu0 %v244
    %v246 = vpop.xlane.xlu0 %245
    %v247 = vsel %vm151, %v243, 0.0
    %248 = vadd.xlane.f32.xlu0 %v247
    %v249 = vpop.xlane.xlu0 %248
    %v250 = vld [vmem:[#allocation2] sm:$0x1]
    %v252 = vlaneseq
    %v253 = vshrl.u32 %v252, 7
    %v254 = vsub.s32 0, %v253
    %v255 = vrot.slane %v250, %v254
    %v257 = vadd.f32 %v246, %v255
    %v258 = vadd.f32 %v249, %v255
    %vm259 = vcmask 7168
    %260 = vst.msk [vmem:[%s7] sm:$0xff] %vm259, %v257
    %261 = vst.msk [vmem:[%s7 + $0x8] sm:$0xff] %vm259, %v258
    // Predicated region
    $region34: #{tpu_custom_call.1} parent=1 // pred_check
      _
    $region35: #{tpu_custom_call.1} parent=1 // pred_check_branch
      %263 = sbr.rel (0) target = $region37
    $region36: #{tpu_custom_call.1} parent=1 // pred_region
      _
    $region37: #{tpu_custom_call.1} parent=1 // pred_fallthru
      _
    // Predicated region
    $region38: #{tpu_custom_call.1} parent=1 // pred_check
      _
    $region39: #{tpu_custom_call.1} parent=1 // pred_check_branch
      %265 = sbr.rel (0) target = $region41
    $region40: #{tpu_custom_call.1} parent=1 // pred_region
      _
    $region41: #{tpu_custom_call.1} parent=1 // pred_fallthru
      _
    %266 = vsyncpa [#allocation4], 1

</llo_original>
